<compile_context>
chip_gen: v7x
topology: tpu7x:2x2x1
jax: 0.10.0
libtpu: 0.0.40
codegen_flags: <defaults>
</compile_context>

<pallas_src>
import functools

import jax
import jax.numpy as jnp
from jax.experimental import pallas as pl
from jax.experimental.pallas import tpu as pltpu

n_embed = 64
block_size = 32

_NEG_BIAS = -1e30   # finite: exp underflows to exactly 0, no NaN risk on any row
_MAX_BBLK = 64      # per-step blocks stay far below scoped VMEM even on v7x


def _mha_kernel(x_ref, wqkv_ref, wp_ref, bp_ref, o_ref, ocat_ref, *, num_heads):
    Bblk, T, C = x_ref.shape
    H = num_heads
    hs = C // H
    N = Bblk * T
    scale = C ** (-0.5)          # matches reference: x.shape[-1] ** -0.5 (n_embed)

    # --- one wide MXU pass for all heads' q, k and v projections ------------
    x2 = x_ref[...].reshape(N, C)                                   # (N, C)
    qkv = jnp.dot(x2, wqkv_ref[...],
                  preferred_element_type=jnp.float32)               # (N, 3C)

    # --- causal additive bias, built once, added once to the full slab ------
    row = jax.lax.broadcasted_iota(jnp.int32, (T, T), 0)
    col = jax.lax.broadcasted_iota(jnp.int32, (T, T), 1)
    bias = jnp.where(col <= row, jnp.float32(0.0),
                     jnp.float32(_NEG_BIAS))[None]                  # (1, T, T)

    # --- scores for every head, stacked on the leading axis -----------------
    s_list = []
    for h in range(H):                                              # H static -> unrolled
        q_h = qkv[:, h * hs:(h + 1) * hs].reshape(Bblk, T, hs) * scale
        k_h = qkv[:, C + h * hs:C + (h + 1) * hs].reshape(Bblk, T, hs)
        s_list.append(jnp.einsum('bqd,bkd->bqk', q_h, k_h,
                                 preferred_element_type=jnp.float32))
    s = jnp.concatenate(s_list, axis=0)                             # (H*Bblk, T, T)
    s = s + bias                                                    # one masked-bias add

    # --- softmax with deferred normalization (one pass over all heads) ------
    m = s.max(axis=-1, keepdims=True)                               # (H*Bblk, T, 1)
    e = jnp.exp(s - m)
    inv = 1.0 / e.sum(axis=-1, keepdims=True)                       # exact reciprocal

    # --- PV per head, stitched into an (N, C) scratch -----------------------
    for h in range(H):
        e_h = e[h * Bblk:(h + 1) * Bblk]                            # (Bblk, T, T)
        v_h = qkv[:, 2 * C + h * hs:2 * C + (h + 1) * hs].reshape(Bblk, T, hs)
        o_h = jnp.einsum('bqk,bkd->bqd', e_h, v_h,
                         preferred_element_type=jnp.float32)        # (Bblk, T, hs)
        o_h = o_h * inv[h * Bblk:(h + 1) * Bblk]                    # normalize output
        ocat_ref[:, h * hs:(h + 1) * hs] = o_h.reshape(N, hs)

    # --- single K=64 output projection ---------------------------------------
    out = jnp.dot(ocat_ref[...], wp_ref[...],
                  preferred_element_type=jnp.float32) + bp_ref[...]  # (N, C)
    o_ref[...] = out.reshape(Bblk, T, C).astype(o_ref.dtype)


def _tensorcores_per_device():
    """2 on v7x-style / megacore chips, 1 on v5e / v6e.  Conservative default 2."""
    try:
        kind = jax.devices()[0].device_kind.lower()
    except Exception:
        return 2
    if ("v5 lite" in kind) or ("v5e" in kind) or ("v6" in kind):
        return 1
    return 2


def _pick_bblk(batch, n_cores):
    """Batch rows per grid step.

    Single-TC chips: one grid step (largest MXU M dim, no per-step overhead).
    Multi-TC chips: grid == n_cores (balanced, max N per core) when batch divides
    evenly; otherwise bblk=1 so every core still gets work.
    """
    if n_cores <= 1:
        cand = batch
    elif batch % n_cores == 0:
        cand = batch // n_cores
    else:
        cand = 1
    cand = max(1, min(cand, _MAX_BBLK))
    while batch % cand:                 # largest divisor of batch <= cap
        cand -= 1
    return cand


@jax.jit
def multi_head_attention(x, wq, wk, wv, wp, bp):
    """x: (B, T, C); wq/wk/wv: (H, C, hs); wp: (C, C); bp: (1, C)."""
    B, T, C = x.shape
    H, _, hs = wq.shape
    assert H * hs == C

    # Fused QKV weight (C, 3C). Column layout: [q_h0..q_hH-1 | k_* | v_*].
    def _flat(w):                                  # (H, C, hs) -> (C, H*hs)
        return jnp.transpose(w, (1, 0, 2)).reshape(C, H * hs)

    wqkv = jnp.concatenate([_flat(wq), _flat(wk), _flat(wv)], axis=1)

    bblk = _pick_bblk(B, _tensorcores_per_device())
    assert B % bblk == 0
    grid = (B // bblk,)

    kernel = functools.partial(_mha_kernel, num_heads=H)
    return pl.pallas_call(
        kernel,
        out_shape=jax.ShapeDtypeStruct((B, T, C), x.dtype),
        grid_spec=pltpu.PrefetchScalarGridSpec(
            num_scalar_prefetch=0,
            grid=grid,
            in_specs=[
                pl.BlockSpec((bblk, T, C), lambda b: (b, 0, 0)),   # x block
                pl.BlockSpec((C, 3 * C), lambda b: (0, 0)),        # fused W_qkv
                pl.BlockSpec((C, C), lambda b: (0, 0)),            # W_proj
                pl.BlockSpec((1, C), lambda b: (0, 0)),            # b_proj
            ],
            out_specs=pl.BlockSpec((bblk, T, C), lambda b: (b, 0, 0)),
            scratch_shapes=[pltpu.VMEM((bblk * T, C), jnp.float32)],  # stitched heads
        ),
        compiler_params=pltpu.CompilerParams(
            dimension_semantics=("parallel",)),
    )(x, wqkv, wp, bp)


def _reference(x, wq, wk, wv, wp, bp):
    """Pure-JAX reference mirroring the PyTorch forward."""
    B, T, C = x.shape
    H = wq.shape[0]
    causal = jnp.tril(jnp.ones((T, T), dtype=bool))
    outs = []
    for h in range(H):
        q = x @ wq[h]
        k = x @ wk[h]
        v = x @ wv[h]
        wei = (q @ jnp.swapaxes(k, -2, -1)) * C ** (-0.5)
        wei = jnp.where(causal, wei, -jnp.inf)
        wei = jax.nn.softmax(wei, axis=-1)
        outs.append(wei @ v)
    cat = jnp.concatenate(outs, axis=-1)
    return cat @ wp + bp[0]


def _make_params(key, num_heads, head_size):
    k_q, k_k, k_v, k_p, k_b = jax.random.split(key, 5)
    s = (1.0 / n_embed) ** 0.5
    wq = jax.random.uniform(k_q, (num_heads, n_embed, head_size), jnp.float32, -s, s)
    wk = jax.random.uniform(k_k, (num_heads, n_embed, head_size), jnp.float32, -s, s)
    wv = jax.random.uniform(k_v, (num_heads, n_embed, head_size), jnp.float32, -s, s)
    wp = jax.random.uniform(k_p, (n_embed, n_embed), jnp.float32, -s, s)
    bp = jax.random.uniform(k_b, (1, n_embed), jnp.float32, -s, s)
    return wq, wk, wv, wp, bp


if __name__ == "__main__":
    key = jax.random.PRNGKey(0)
    num_heads, head_size = 4, n_embed // 4
    k_par, k_x1, k_x2 = jax.random.split(key, 3)
    wq, wk, wv, wp, bp = _make_params(k_par, num_heads, head_size)

    # Case 1: small shape matching the original test (B=2, T=8).
    x1 = jax.random.normal(k_x1, (2, 8, n_embed), dtype=jnp.float32)
    out1 = jax.block_until_ready(multi_head_attention(x1, wq, wk, wv, wp, bp))
    ref1 = _reference(x1, wq, wk, wv, wp, bp)
    assert out1.shape == x1.shape
    assert jnp.allclose(out1, ref1, atol=1e-5, rtol=1e-5), "mismatch (B=2, T=8)"

    # Case 2: full block_size sequence (B=8, T=32).
    x2 = jax.random.normal(k_x2, (8, block_size, n_embed), dtype=jnp.float32)
    out2 = jax.block_until_ready(multi_head_attention(x2, wq, wk, wv, wp, bp))
    ref2 = _reference(x2, wq, wk, wv, wp, bp)
    assert out2.shape == x2.shape
    assert jnp.allclose(out2, ref2, atol=1e-4, rtol=1e-4), "mismatch (B=8, T=32)"

    print("KERNEL_OK")
</pallas_src>

<mosaic_0001>
module attributes {stable_mosaic.version = 11 : i64} {
  func.func @_mha_kernel(%arg0: i32, %arg1: memref<1x8x64xf32, #tpu.memory_space<vmem>>, %arg2: memref<64x192xf32, #tpu.memory_space<vmem>>, %arg3: memref<64x64xf32, #tpu.memory_space<vmem>>, %arg4: memref<1x64xf32, #tpu.memory_space<vmem>>, %arg5: memref<1x8x64xf32, #tpu.memory_space<vmem>>, %arg6: memref<8x64xf32, #tpu.memory_space<vmem>>) attributes {dimension_semantics = [#tpu.dimension_semantics<parallel>], iteration_bounds = array<i64: 2>, scalar_prefetch = 0 : i64, scratch_operands = 1 : i64, tpu.core_type = #tpu.core_type<tc>, window_params = [{transform_indices = @transform_0, window_bounds = array<i64: 1, 8, 64>}, {pipeline_mode = #tpu.pipeline_mode<synchronous>, transform_indices = @transform_1, window_bounds = array<i64: 64, 192>}, {pipeline_mode = #tpu.pipeline_mode<synchronous>, transform_indices = @transform_2, window_bounds = array<i64: 64, 64>}, {pipeline_mode = #tpu.pipeline_mode<synchronous>, transform_indices = @transform_3, window_bounds = array<i64: 1, 64>}, {transform_indices = @transform_4, window_bounds = array<i64: 1, 8, 64>}]} {
    %c0 = arith.constant 0 : index
    %c0_0 = arith.constant 0 : index
    %c0_1 = arith.constant 0 : index
    %0 = vector.load %arg1[%c0, %c0_0, %c0_1] : memref<1x8x64xf32, #tpu.memory_space<vmem>>, vector<1x8x64xf32>
    %1 = vector.shape_cast %0 : vector<1x8x64xf32> to vector<8x64xf32>
    %c0_2 = arith.constant 0 : index
    %c0_3 = arith.constant 0 : index
    %2 = vector.load %arg2[%c0_2, %c0_3] : memref<64x192xf32, #tpu.memory_space<vmem>>, vector<64x192xf32>
    %cst = arith.constant dense<0.000000e+00> : vector<8x192xf32>
    %3 = tpu.matmul %1, %2, %cst {dimension_numbers = #tpu.dot_dimension_numbers<[1], [0], [0], [1], [0, 0, 1, 1], [], []>} : vector<8x64xf32>, vector<64x192xf32>, vector<8x192xf32> -> vector<8x192xf32>
    %4 = tpu.iota {dimensions = array<i32: 0>} : vector<8x8xi32>
    %5 = tpu.iota {dimensions = array<i32: 1>} : vector<8x8xi32>
    %6 = arith.cmpi sle, %5, %4 : vector<8x8xi32>
    %cst_4 = arith.constant 0.000000e+00 : f32
    %cst_5 = arith.constant -1.000000e+30 : f32
    %7 = vector.broadcast %cst_4 : f32 to vector<8x8xf32>
    %8 = vector.broadcast %cst_5 : f32 to vector<8x8xf32>
    %9 = arith.select %6, %7, %8 : vector<8x8xi1>, vector<8x8xf32>
    %10 = vector.shape_cast %9 : vector<8x8xf32> to vector<1x8x8xf32>
    %11 = vector.extract_strided_slice %3 {offsets = [0, 0], sizes = [8, 16], strides = [1, 1]} : vector<8x192xf32> to vector<8x16xf32>
    %12 = vector.shape_cast %11 : vector<8x16xf32> to vector<1x8x16xf32>
    %cst_6 = arith.constant 1.250000e-01 : f32
    %13 = vector.broadcast %cst_6 : f32 to vector<1x8x16xf32>
    %14 = arith.mulf %12, %13 : vector<1x8x16xf32>
    %15 = vector.extract_strided_slice %3 {offsets = [0, 64], sizes = [8, 16], strides = [1, 1]} : vector<8x192xf32> to vector<8x16xf32>
    %16 = vector.shape_cast %15 : vector<8x16xf32> to vector<1x8x16xf32>
    "tpu.trace_start"() <{level = 10 : i32, message = "bqd,bkd->bqk"}> : () -> ()
    %cst_7 = arith.constant dense<0.000000e+00> : vector<1x8x8xf32>
    %17 = tpu.matmul %14, %16, %cst_7 {dimension_numbers = #tpu.dot_dimension_numbers<[2], [2], [1], [1], [0, 0, 0, 1, 1, 1], [0], [0]>} : vector<1x8x16xf32>, vector<1x8x16xf32>, vector<1x8x8xf32> -> vector<1x8x8xf32>
    "tpu.trace_stop"() : () -> ()
    %18 = vector.extract_strided_slice %3 {offsets = [0, 16], sizes = [8, 16], strides = [1, 1]} : vector<8x192xf32> to vector<8x16xf32>
    %19 = vector.shape_cast %18 : vector<8x16xf32> to vector<1x8x16xf32>
    %cst_8 = arith.constant 1.250000e-01 : f32
    %20 = vector.broadcast %cst_8 : f32 to vector<1x8x16xf32>
    %21 = arith.mulf %19, %20 : vector<1x8x16xf32>
    %22 = vector.extract_strided_slice %3 {offsets = [0, 80], sizes = [8, 16], strides = [1, 1]} : vector<8x192xf32> to vector<8x16xf32>
    %23 = vector.shape_cast %22 : vector<8x16xf32> to vector<1x8x16xf32>
    "tpu.trace_start"() <{level = 10 : i32, message = "bqd,bkd->bqk"}> : () -> ()
    %cst_9 = arith.constant dense<0.000000e+00> : vector<1x8x8xf32>
    %24 = tpu.matmul %21, %23, %cst_9 {dimension_numbers = #tpu.dot_dimension_numbers<[2], [2], [1], [1], [0, 0, 0, 1, 1, 1], [0], [0]>} : vector<1x8x16xf32>, vector<1x8x16xf32>, vector<1x8x8xf32> -> vector<1x8x8xf32>
    "tpu.trace_stop"() : () -> ()
    %25 = vector.extract_strided_slice %3 {offsets = [0, 32], sizes = [8, 16], strides = [1, 1]} : vector<8x192xf32> to vector<8x16xf32>
    %26 = vector.shape_cast %25 : vector<8x16xf32> to vector<1x8x16xf32>
    %cst_10 = arith.constant 1.250000e-01 : f32
    %27 = vector.broadcast %cst_10 : f32 to vector<1x8x16xf32>
    %28 = arith.mulf %26, %27 : vector<1x8x16xf32>
    %29 = vector.extract_strided_slice %3 {offsets = [0, 96], sizes = [8, 16], strides = [1, 1]} : vector<8x192xf32> to vector<8x16xf32>
    %30 = vector.shape_cast %29 : vector<8x16xf32> to vector<1x8x16xf32>
    "tpu.trace_start"() <{level = 10 : i32, message = "bqd,bkd->bqk"}> : () -> ()
    %cst_11 = arith.constant dense<0.000000e+00> : vector<1x8x8xf32>
    %31 = tpu.matmul %28, %30, %cst_11 {dimension_numbers = #tpu.dot_dimension_numbers<[2], [2], [1], [1], [0, 0, 0, 1, 1, 1], [0], [0]>} : vector<1x8x16xf32>, vector<1x8x16xf32>, vector<1x8x8xf32> -> vector<1x8x8xf32>
    "tpu.trace_stop"() : () -> ()
    %32 = vector.extract_strided_slice %3 {offsets = [0, 48], sizes = [8, 16], strides = [1, 1]} : vector<8x192xf32> to vector<8x16xf32>
    %33 = vector.shape_cast %32 : vector<8x16xf32> to vector<1x8x16xf32>
    %cst_12 = arith.constant 1.250000e-01 : f32
    %34 = vector.broadcast %cst_12 : f32 to vector<1x8x16xf32>
    %35 = arith.mulf %33, %34 : vector<1x8x16xf32>
    %36 = vector.extract_strided_slice %3 {offsets = [0, 112], sizes = [8, 16], strides = [1, 1]} : vector<8x192xf32> to vector<8x16xf32>
    %37 = vector.shape_cast %36 : vector<8x16xf32> to vector<1x8x16xf32>
    "tpu.trace_start"() <{level = 10 : i32, message = "bqd,bkd->bqk"}> : () -> ()
    %cst_13 = arith.constant dense<0.000000e+00> : vector<1x8x8xf32>
    %38 = tpu.matmul %35, %37, %cst_13 {dimension_numbers = #tpu.dot_dimension_numbers<[2], [2], [1], [1], [0, 0, 0, 1, 1, 1], [0], [0]>} : vector<1x8x16xf32>, vector<1x8x16xf32>, vector<1x8x8xf32> -> vector<1x8x8xf32>
    "tpu.trace_stop"() : () -> ()
    %39 = tpu.concatenate %17, %24, %31, %38 in 0 : vector<1x8x8xf32>, vector<1x8x8xf32>, vector<1x8x8xf32>, vector<1x8x8xf32> -> vector<4x8x8xf32>
    %40 = vector.broadcast %10 : vector<1x8x8xf32> to vector<4x8x8xf32>
    %41 = arith.addf %39, %40 : vector<4x8x8xf32>
    %cst_14 = arith.constant dense<0xFF800000> : vector<4x8xf32>
    %42 = vector.multi_reduction <maximumf>, %41, %cst_14 [2] : vector<4x8x8xf32> to vector<4x8xf32>
    %43 = vector.shape_cast %42 : vector<4x8xf32> to vector<4x8x1xf32>
    %44 = vector.broadcast %43 : vector<4x8x1xf32> to vector<4x8x8xf32>
    %45 = arith.subf %41, %44 : vector<4x8x8xf32>
    %46 = math.exp %45 : vector<4x8x8xf32>
    %cst_15 = arith.constant dense<0.000000e+00> : vector<4x8xf32>
    %47 = vector.multi_reduction <add>, %46, %cst_15 [2] : vector<4x8x8xf32> to vector<4x8xf32>
    %48 = vector.shape_cast %47 : vector<4x8xf32> to vector<4x8x1xf32>
    %cst_16 = arith.constant 1.000000e+00 : f32
    %49 = vector.broadcast %cst_16 : f32 to vector<4x8x1xf32>
    %50 = arith.divf %49, %48 : vector<4x8x1xf32>
    %51 = vector.extract_strided_slice %46 {offsets = [0, 0, 0], sizes = [1, 8, 8], strides = [1, 1, 1]} : vector<4x8x8xf32> to vector<1x8x8xf32>
    %52 = vector.extract_strided_slice %3 {offsets = [0, 128], sizes = [8, 16], strides = [1, 1]} : vector<8x192xf32> to vector<8x16xf32>
    %53 = vector.shape_cast %52 : vector<8x16xf32> to vector<1x8x16xf32>
    "tpu.trace_start"() <{level = 10 : i32, message = "bqk,bkd->bqd"}> : () -> ()
    %cst_17 = arith.constant dense<0.000000e+00> : vector<1x8x16xf32>
    %54 = tpu.matmul %51, %53, %cst_17 {dimension_numbers = #tpu.dot_dimension_numbers<[2], [1], [1], [2], [0, 0, 0, 1, 1, 2], [0], [0]>} : vector<1x8x8xf32>, vector<1x8x16xf32>, vector<1x8x16xf32> -> vector<1x8x16xf32>
    "tpu.trace_stop"() : () -> ()
    %55 = vector.extract_strided_slice %50 {offsets = [0, 0, 0], sizes = [1, 8, 1], strides = [1, 1, 1]} : vector<4x8x1xf32> to vector<1x8x1xf32>
    %56 = vector.broadcast %55 : vector<1x8x1xf32> to vector<1x8x16xf32>
    %57 = arith.mulf %54, %56 : vector<1x8x16xf32>
    %58 = vector.shape_cast %57 : vector<1x8x16xf32> to vector<8x16xf32>
    %c0_18 = arith.constant 0 : index
    %c0_19 = arith.constant 0 : index
    %59 = vector.load %arg6[%c0_18, %c0_19] : memref<8x64xf32, #tpu.memory_space<vmem>>, vector<8x16xf32>
    tpu.vector_store %arg6[%c0_18, %c0_19], %58 {strides = array<i32>} : memref<8x64xf32, #tpu.memory_space<vmem>>, vector<8x16xf32>,
    %60 = vector.extract_strided_slice %46 {offsets = [1, 0, 0], sizes = [1, 8, 8], strides = [1, 1, 1]} : vector<4x8x8xf32> to vector<1x8x8xf32>
    %61 = vector.extract_strided_slice %3 {offsets = [0, 144], sizes = [8, 16], strides = [1, 1]} : vector<8x192xf32> to vector<8x16xf32>
    %62 = vector.shape_cast %61 : vector<8x16xf32> to vector<1x8x16xf32>
    "tpu.trace_start"() <{level = 10 : i32, message = "bqk,bkd->bqd"}> : () -> ()
    %cst_20 = arith.constant dense<0.000000e+00> : vector<1x8x16xf32>
    %63 = tpu.matmul %60, %62, %cst_20 {dimension_numbers = #tpu.dot_dimension_numbers<[2], [1], [1], [2], [0, 0, 0, 1, 1, 2], [0], [0]>} : vector<1x8x8xf32>, vector<1x8x16xf32>, vector<1x8x16xf32> -> vector<1x8x16xf32>
    "tpu.trace_stop"() : () -> ()
    %64 = vector.extract_strided_slice %50 {offsets = [1, 0, 0], sizes = [1, 8, 1], strides = [1, 1, 1]} : vector<4x8x1xf32> to vector<1x8x1xf32>
    %65 = vector.broadcast %64 : vector<1x8x1xf32> to vector<1x8x16xf32>
    %66 = arith.mulf %63, %65 : vector<1x8x16xf32>
    %67 = vector.shape_cast %66 : vector<1x8x16xf32> to vector<8x16xf32>
    %c0_21 = arith.constant 0 : index
    %c16 = arith.constant 16 : index
    %68 = vector.load %arg6[%c0_21, %c16] : memref<8x64xf32, #tpu.memory_space<vmem>>, vector<8x16xf32>
    tpu.vector_store %arg6[%c0_21, %c16], %67 {strides = array<i32>} : memref<8x64xf32, #tpu.memory_space<vmem>>, vector<8x16xf32>,
    %69 = vector.extract_strided_slice %46 {offsets = [2, 0, 0], sizes = [1, 8, 8], strides = [1, 1, 1]} : vector<4x8x8xf32> to vector<1x8x8xf32>
    %70 = vector.extract_strided_slice %3 {offsets = [0, 160], sizes = [8, 16], strides = [1, 1]} : vector<8x192xf32> to vector<8x16xf32>
    %71 = vector.shape_cast %70 : vector<8x16xf32> to vector<1x8x16xf32>
    "tpu.trace_start"() <{level = 10 : i32, message = "bqk,bkd->bqd"}> : () -> ()
    %cst_22 = arith.constant dense<0.000000e+00> : vector<1x8x16xf32>
    %72 = tpu.matmul %69, %71, %cst_22 {dimension_numbers = #tpu.dot_dimension_numbers<[2], [1], [1], [2], [0, 0, 0, 1, 1, 2], [0], [0]>} : vector<1x8x8xf32>, vector<1x8x16xf32>, vector<1x8x16xf32> -> vector<1x8x16xf32>
    "tpu.trace_stop"() : () -> ()
    %73 = vector.extract_strided_slice %50 {offsets = [2, 0, 0], sizes = [1, 8, 1], strides = [1, 1, 1]} : vector<4x8x1xf32> to vector<1x8x1xf32>
    %74 = vector.broadcast %73 : vector<1x8x1xf32> to vector<1x8x16xf32>
    %75 = arith.mulf %72, %74 : vector<1x8x16xf32>
    %76 = vector.shape_cast %75 : vector<1x8x16xf32> to vector<8x16xf32>
    %c0_23 = arith.constant 0 : index
    %c32 = arith.constant 32 : index
    %77 = vector.load %arg6[%c0_23, %c32] : memref<8x64xf32, #tpu.memory_space<vmem>>, vector<8x16xf32>
    tpu.vector_store %arg6[%c0_23, %c32], %76 {strides = array<i32>} : memref<8x64xf32, #tpu.memory_space<vmem>>, vector<8x16xf32>,
    %78 = vector.extract_strided_slice %46 {offsets = [3, 0, 0], sizes = [1, 8, 8], strides = [1, 1, 1]} : vector<4x8x8xf32> to vector<1x8x8xf32>
    %79 = vector.extract_strided_slice %3 {offsets = [0, 176], sizes = [8, 16], strides = [1, 1]} : vector<8x192xf32> to vector<8x16xf32>
    %80 = vector.shape_cast %79 : vector<8x16xf32> to vector<1x8x16xf32>
    "tpu.trace_start"() <{level = 10 : i32, message = "bqk,bkd->bqd"}> : () -> ()
    %cst_24 = arith.constant dense<0.000000e+00> : vector<1x8x16xf32>
    %81 = tpu.matmul %78, %80, %cst_24 {dimension_numbers = #tpu.dot_dimension_numbers<[2], [1], [1], [2], [0, 0, 0, 1, 1, 2], [0], [0]>} : vector<1x8x8xf32>, vector<1x8x16xf32>, vector<1x8x16xf32> -> vector<1x8x16xf32>
    "tpu.trace_stop"() : () -> ()
    %82 = vector.extract_strided_slice %50 {offsets = [3, 0, 0], sizes = [1, 8, 1], strides = [1, 1, 1]} : vector<4x8x1xf32> to vector<1x8x1xf32>
    %83 = vector.broadcast %82 : vector<1x8x1xf32> to vector<1x8x16xf32>
    %84 = arith.mulf %81, %83 : vector<1x8x16xf32>
    %85 = vector.shape_cast %84 : vector<1x8x16xf32> to vector<8x16xf32>
    %c0_25 = arith.constant 0 : index
    %c48 = arith.constant 48 : index
    %86 = vector.load %arg6[%c0_25, %c48] : memref<8x64xf32, #tpu.memory_space<vmem>>, vector<8x16xf32>
    tpu.vector_store %arg6[%c0_25, %c48], %85 {strides = array<i32>} : memref<8x64xf32, #tpu.memory_space<vmem>>, vector<8x16xf32>,
    %c0_26 = arith.constant 0 : index
    %c0_27 = arith.constant 0 : index
    %87 = vector.load %arg6[%c0_26, %c0_27] : memref<8x64xf32, #tpu.memory_space<vmem>>, vector<8x64xf32>
    %c0_28 = arith.constant 0 : index
    %c0_29 = arith.constant 0 : index
    %88 = vector.load %arg3[%c0_28, %c0_29] : memref<64x64xf32, #tpu.memory_space<vmem>>, vector<64x64xf32>
    %cst_30 = arith.constant dense<0.000000e+00> : vector<8x64xf32>
    %89 = tpu.matmul %87, %88, %cst_30 {dimension_numbers = #tpu.dot_dimension_numbers<[1], [0], [0], [1], [0, 0, 1, 1], [], []>} : vector<8x64xf32>, vector<64x64xf32>, vector<8x64xf32> -> vector<8x64xf32>
    %c0_31 = arith.constant 0 : index
    %c0_32 = arith.constant 0 : index
    %90 = vector.load %arg4[%c0_31, %c0_32] : memref<1x64xf32, #tpu.memory_space<vmem>>, vector<1x64xf32>
    %91 = vector.broadcast %90 : vector<1x64xf32> to vector<8x64xf32>
    %92 = arith.addf %89, %91 : vector<8x64xf32>
    %93 = vector.shape_cast %92 : vector<8x64xf32> to vector<1x8x64xf32>
    %c0_33 = arith.constant 0 : index
    %c0_34 = arith.constant 0 : index
    %c0_35 = arith.constant 0 : index
    %94 = vector.load %arg5[%c0_33, %c0_34, %c0_35] : memref<1x8x64xf32, #tpu.memory_space<vmem>>, vector<1x8x64xf32>
    tpu.vector_store %arg5[%c0_33, %c0_34, %c0_35], %93 {strides = array<i32>} : memref<1x8x64xf32, #tpu.memory_space<vmem>>, vector<1x8x64xf32>,
    return
  }
  func.func @transform_0(%arg0: i32) -> (i32, i32, i32) {
    %c0_i32 = arith.constant 0 : i32
    %c0_i32_0 = arith.constant 0 : i32
    %c0_i32_1 = arith.constant 0 : i32
    return %arg0, %c0_i32, %c0_i32_0 : i32, i32, i32
  }
  func.func @transform_1(%arg0: i32) -> (i32, i32) {
    %c0_i32 = arith.constant 0 : i32
    %c0_i32_0 = arith.constant 0 : i32
    %c0_i32_1 = arith.constant 0 : i32
    return %c0_i32, %c0_i32_0 : i32, i32
  }
  func.func @transform_2(%arg0: i32) -> (i32, i32) {
    %c0_i32 = arith.constant 0 : i32
    %c0_i32_0 = arith.constant 0 : i32
    %c0_i32_1 = arith.constant 0 : i32
    return %c0_i32, %c0_i32_0 : i32, i32
  }
  func.func @transform_3(%arg0: i32) -> (i32, i32) {
    %c0_i32 = arith.constant 0 : i32
    %c0_i32_0 = arith.constant 0 : i32
    %c0_i32_1 = arith.constant 0 : i32
    return %c0_i32, %c0_i32_0 : i32, i32
  }
  func.func @transform_4(%arg0: i32) -> (i32, i32, i32) {
    %c0_i32 = arith.constant 0 : i32
    %c0_i32_0 = arith.constant 0 : i32
    %c0_i32_1 = arith.constant 0 : i32
    return %arg0, %c0_i32, %c0_i32_0 : i32, i32, i32
  }
}

</mosaic_0001>

<llo_original>
// kernel: multi_head_attention.1
$region0: #{multi_head_attention.1}
  #allocation0 [shape = 'u32[]', space=smem, size = 0x4, offset = 0x4, fixed_abs, tag = 'smem constant byte address 0x4 - core index']
  #allocation1 [shape = 'u32[144,128]{1,0:T(1,128)}', space=vmem, size = 0x12000, scoped, tag = 'internal scratch']
  #allocation2 [shape = 'f32[8,64]{1,0:T(8,128)}', space=vmem, size = 0x1000, scoped, tag = 'scratch operand']
  %s0 = inlined_call_operand.vmem [shape: f32[2,8,64], index: 0, kind: input, shape index: {}]
  %s1 = inlined_call_operand.vmem [shape: f32[64,192], index: 1, kind: input, shape index: {}]
  %s2 = inlined_call_operand.vmem [shape: f32[64,64], index: 2, kind: input, shape index: {}]
  %s3 = inlined_call_operand.vmem [shape: f32[1,64], index: 3, kind: input, shape index: {}]
  %s4 = inlined_call_operand.hbm [shape: f32[2,8,64], index: 4, kind: output, shape index: {}]
  %s5 = sld [smem:[#allocation0]]
  $region49: #{multi_head_attention.1} parent=0
    _
  %s7 = ssub.s32 1, %s5
  %s8 = scalar_select 0, %s7, %s5
  $region1: #{multi_head_attention.1} parent=0
    #allocation3 [shape = 'u8[8192]{0}', space=vmem, size = 0x2000, scoped, tag = 'output window, operand 0']
    #allocation4 [shape = 's32[2]{0}', space=sflag, size = 0x8, scoped, tag = 'scoped memory for multi_head_attention.1']
    %9 = vsyncpa [#allocation4], 0
    %s10 = scalar_lea.sflag [#allocation4], 1
    %11 = vsyncpa %s10, 0
    loop: start=0, step=1, limit=4
    $region2: #{multi_head_attention.1} parent=1 // loop_pre_header
      _
    $region3: #{multi_head_attention.1} parent=1 // loop_header
      %s13 = sphi 0, %s17
      %p14 = scmp.ge.s32.totalorder %s13, 4
      %s23 = sphi 0, %s25
      %s26 = sphi 0, %s23
      %s27 = sphi 0, %s26
      %s43 = sphi 0, %s27
      %s47 = sphi 0, %s47
      %s49 = sphi 0, %s47
      %s50 = sphi 0, %s49
      %s64 = sphi 0, %s50
      %s68 = sphi 0, %s68
      %s70 = sphi 0, %s68
      %s71 = sphi 0, %s70
      %s85 = sphi 0, %s71
      %s89 = sphi 0, %s89
      %s91 = sphi 0, %s89
      %s92 = sphi 0, %s91
      %s106 = sphi 0, %s92
      %s112 = sphi 0, %s114
      %s115 = sphi 0, %s112
      %s116 = sphi 0, %s115
      %s132 = sphi 0, %s116
    $region4: #{multi_head_attention.1} parent=1 // loop_header_branch
      %16 = sbr.rel (%p14) target = $region8
    $region5: #{multi_head_attention.1} parent=1 // loop_body
      %s18 = ssub.s32 %s13, 1
      %s19 = ssub.s32 %s13, 2
      %s20 = sadd.s32 %s13, 1
      %s21 = ssub.s32 %s13, %s20
      %p22 = scmp.eq.s32.totalorder %s21, 0
      %s24 = sadd.s32 %s23, 1
      %s25 = scalar_select %p22, %s23, %s24
      %p28 = pneg %p22
      %p29 = scmp.eq.s32.totalorder %s13, 1
      %p30 = por %p28, %p29
      %p31 = scmp.ne.s32.totalorder %s23, %s26
      %p32 = scmp.eq.s32.totalorder %s13, 0
      %p33 = por %p31, %p32
      %p34 = scmp.ne.s32.totalorder %s23, %s26
      %p35 = scmp.eq.s32.totalorder %s18, 1
      %p36 = por %p34, %p35
      %p37 = scmp.ne.s32.totalorder %s26, %s27
      %p38 = scmp.eq.s32.totalorder %s18, 0
      %p39 = por %p37, %p38
      %p40 = scmp.ne.s32.totalorder %s26, %s27
      %p41 = scmp.eq.s32.totalorder %s19, 1
      %p42 = por %p40, %p41
      %p44 = scmp.ne.s32.totalorder %s27, %s43
      %p45 = scmp.eq.s32.totalorder %s19, 0
      %p46 = por %p44, %p45
      %s48 = sadd.s32 %s47, 1
      %p51 = scmp.eq.s32.totalorder %s13, 1
      %p52 = scmp.ne.s32.totalorder %s47, %s49
      %p53 = scmp.eq.s32.totalorder %s13, 0
      %p54 = por %p52, %p53
      %p55 = scmp.ne.s32.totalorder %s47, %s49
      %p56 = scmp.eq.s32.totalorder %s18, 1
      %p57 = por %p55, %p56
      %p58 = scmp.ne.s32.totalorder %s49, %s50
      %p59 = scmp.eq.s32.totalorder %s18, 0
      %p60 = por %p58, %p59
      %p61 = scmp.ne.s32.totalorder %s49, %s50
      %p62 = scmp.eq.s32.totalorder %s19, 1
      %p63 = por %p61, %p62
      %p65 = scmp.ne.s32.totalorder %s50, %s64
      %p66 = scmp.eq.s32.totalorder %s19, 0
      %p67 = por %p65, %p66
      %s69 = sadd.s32 %s68, 1
      %p72 = scmp.eq.s32.totalorder %s13, 1
      %p73 = scmp.ne.s32.totalorder %s68, %s70
      %p74 = scmp.eq.s32.totalorder %s13, 0
      %p75 = por %p73, %p74
      %p76 = scmp.ne.s32.totalorder %s68, %s70
      %p77 = scmp.eq.s32.totalorder %s18, 1
      %p78 = por %p76, %p77
      %p79 = scmp.ne.s32.totalorder %s70, %s71
      %p80 = scmp.eq.s32.totalorder %s18, 0
      %p81 = por %p79, %p80
      %p82 = scmp.ne.s32.totalorder %s70, %s71
      %p83 = scmp.eq.s32.totalorder %s19, 1
      %p84 = por %p82, %p83
      %p86 = scmp.ne.s32.totalorder %s71, %s85
      %p87 = scmp.eq.s32.totalorder %s19, 0
      %p88 = por %p86, %p87
      %s90 = sadd.s32 %s89, 1
      %p93 = scmp.eq.s32.totalorder %s13, 1
      %p94 = scmp.ne.s32.totalorder %s89, %s91
      %p95 = scmp.eq.s32.totalorder %s13, 0
      %p96 = por %p94, %p95
      %p97 = scmp.ne.s32.totalorder %s89, %s91
      %p98 = scmp.eq.s32.totalorder %s18, 1
      %p99 = por %p97, %p98
      %p100 = scmp.ne.s32.totalorder %s91, %s92
      %p101 = scmp.eq.s32.totalorder %s18, 0
      %p102 = por %p100, %p101
      %p103 = scmp.ne.s32.totalorder %s91, %s92
      %p104 = scmp.eq.s32.totalorder %s19, 1
      %p105 = por %p103, %p104
      %p107 = scmp.ne.s32.totalorder %s92, %s106
      %p108 = scmp.eq.s32.totalorder %s19, 0
      %p109 = por %p107, %p108
      %s110 = ssub.s32 %s13, %s20
      %p111 = scmp.eq.s32.totalorder %s110, 0
      %s113 = sadd.s32 %s112, 1
      %s114 = scalar_select %p111, %s112, %s113
      %p117 = pneg %p111
      %p118 = scmp.eq.s32.totalorder %s13, 1
      %p119 = por %p117, %p118
      %p120 = scmp.ne.s32.totalorder %s112, %s115
      %p121 = scmp.eq.s32.totalorder %s13, 0
      %p122 = por %p120, %p121
      %p123 = scmp.ne.s32.totalorder %s112, %s115
      %p124 = scmp.eq.s32.totalorder %s18, 1
      %p125 = por %p123, %p124
      %p126 = scmp.ne.s32.totalorder %s115, %s116
      %p127 = scmp.eq.s32.totalorder %s18, 0
      %p128 = por %p126, %p127
      %p129 = scmp.ne.s32.totalorder %s115, %s116
      %p130 = scmp.eq.s32.totalorder %s19, 1
      %p131 = por %p129, %p130
      %p133 = scmp.ne.s32.totalorder %s116, %s132
      %p134 = scmp.eq.s32.totalorder %s19, 0
      %p135 = por %p133, %p134
      %p136 = scmp.le.s32.totalorder 1, %s13
      %p137 = scmp.lt.s32.totalorder %s13, 3
      %p138 = pnand %p136, %p137
      %p139 = pneg %p138
      // Predicated region
      $region9: #{multi_head_attention.1} parent=5 // pred_check
        _
      $region10: #{multi_head_attention.1} parent=5 // pred_check_branch
        %141 = sbr.rel (%p138) target = $region12
      $region11: #{multi_head_attention.1} parent=5 // pred_region
        %s142 = ssub.s32 %s13, 1
        // Predicated region
        $region13: #{multi_head_attention.1} parent=11 // pred_check
          %p143 = pneg %p60
        $region14: #{multi_head_attention.1} parent=11 // pred_check_branch
          %145 = sbr.rel (%p143) target = $region16
        $region15: #{multi_head_attention.1} parent=11 // pred_region
          _
        $region16: #{multi_head_attention.1} parent=11 // pred_fallthru
          _
        // Predicated region
        $region17: #{multi_head_attention.1} parent=11 // pred_check
          %p146 = pneg %p81
        $region18: #{multi_head_attention.1} parent=11 // pred_check_branch
          %148 = sbr.rel (%p146) target = $region20
        $region19: #{multi_head_attention.1} parent=11 // pred_region
          _
        $region20: #{multi_head_attention.1} parent=11 // pred_fallthru
          _
        // Predicated region
        $region21: #{multi_head_attention.1} parent=11 // pred_check
          %p149 = pneg %p102
        $region22: #{multi_head_attention.1} parent=11 // pred_check_branch
          %151 = sbr.rel (%p149) target = $region24
        $region23: #{multi_head_attention.1} parent=11 // pred_region
          _
        $region24: #{multi_head_attention.1} parent=11 // pred_fallthru
          _
      $region12: #{multi_head_attention.1} parent=5 // pred_fallthru
        _
      %p152 = scmp.lt.s32.totalorder %s13, 2
      // Predicated region
      $region25: #{multi_head_attention.1} parent=5 // pred_check
        %p153 = pneg %p152
      $region26: #{multi_head_attention.1} parent=5 // pred_check_branch
        %155 = sbr.rel (%p153) target = $region28
      $region27: #{multi_head_attention.1} parent=5 // pred_region
        // Predicated region
        $region29: #{multi_head_attention.1} parent=27 // pred_check
          %p156 = pneg %p33
        $region30: #{multi_head_attention.1} parent=27 // pred_check_branch
          %158 = sbr.rel (%p156) target = $region32
        $region31: #{multi_head_attention.1} parent=27 // pred_region
          %p159 = scmp.lt.s32.totalorder %s13, 1
          %s160 = scalar_select %p159, %s13, 1
          %s161 = smul.addr %s160, 8
          %s162 = scalar_lea.vmem %s0, %s161
        $region32: #{multi_head_attention.1} parent=27 // pred_fallthru
          _
      $region28: #{multi_head_attention.1} parent=5 // pred_fallthru
        _
      %p163 = scmp.le.s32.totalorder 1, %s13
      %p164 = scmp.lt.s32.totalorder %s13, 3
      %p165 = pnand %p163, %p164
      %p166 = pneg %p165
      // Predicated region
      $region33: #{multi_head_attention.1} parent=5 // pred_check
        _
      $region34: #{multi_head_attention.1} parent=5 // pred_check_branch
        %168 = sbr.rel (%p165) target = $region36
      $region35: #{multi_head_attention.1} parent=5 // pred_region
        %s169 = ssub.s32 %s13, 1
        %p170 = scmp.lt.s32.totalorder %s18, 1
        %s171 = scalar_select %p170, %s18, 1
        %s172 = smul.addr %s171, 8
        %s173 = scalar_lea.vmem %s0, %s172
        %p174 = pneg %p39
        %p175 = pneg %p36
        %p176 = pneg %p60
        %p177 = pneg %p57
        %p178 = pneg %p81
        %p179 = pneg %p78
        %p180 = pneg %p102
        %p181 = pneg %p99
        %p182 = pneg %p128
        %p183 = pneg %p125
        %s184 = sand.u32 %s115, 1
        %s185 = scalar_lea.sflag [#allocation4], %s184
        %s186 = sand.u32 %s115, 1
        %s187 = smul.addr %s186, 8
        %s188 = scalar_lea.vmem [#allocation3], %s187
        %p189 = scmp.lt.s32.totalorder %s18, 1
        %s190 = scalar_select %p189, %s18, 1
        %s191 = smul.addr %s190, 8
        %s192 = scalar_lea.vmem %s0, %s191
        %v193 = vld [vmem:[%s192] sm:$0xff]
        %v194 = vld [vmem:[%s1] sm:$0xff]
        %v195 = vld [vmem:[%s1 + $0x8] sm:$0xff]
        %v196 = vld [vmem:[%s1 + $0x10] sm:$0xff]
        %v197 = vld [vmem:[%s1 + $0x18] sm:$0xff]
        %v198 = vld [vmem:[%s1 + $0x20] sm:$0xff]
        %v199 = vld [vmem:[%s1 + $0x28] sm:$0xff]
        %v200 = vld [vmem:[%s1 + $0x30] sm:$0xff]
        %v201 = vld [vmem:[%s1 + $0x38] sm:$0xff]
        %v202 = vld [vmem:[%s1 + $0x40] sm:$0xff]
        %v203 = vld [vmem:[%s1 + $0x48] sm:$0xff]
        %v204 = vld [vmem:[%s1 + $0x50] sm:$0xff]
        %v205 = vld [vmem:[%s1 + $0x58] sm:$0xff]
        %v206 = vld [vmem:[%s1 + $0x60] sm:$0xff]
        %v207 = vld [vmem:[%s1 + $0x68] sm:$0xff]
        %v208 = vld [vmem:[%s1 + $0x70] sm:$0xff]
        %v209 = vld [vmem:[%s1 + $0x78] sm:$0xff]
        %vm210 = vcmask 523264
        %v212 = vsel %vm210, %v193, 0
        %214 = vmatprep.subr.mxu0 %v195
        %215 = vmatpush1.msra.mxu0 %v194
        %216 = vmatprep.subr.mxu0 %v197
        %217 = vmatpush1.msra.mxu0 %v196
        %218 = vmatprep.subr.mxu0 %v199
        %219 = vmatpush1.msra.mxu0 %v198
        %220 = vmatprep.subr.mxu0 %v201
        %221 = vmatpush1.msra.mxu0 %v200
        %222 = vmatprep.subr.mxu0 %v203
        %223 = vmatpush1.msra.mxu0 %v202
        %224 = vmatprep.subr.mxu0 %v205
        %225 = vmatpush1.msra.mxu0 %v204
        %226 = vmatprep.subr.mxu0 %v207
        %227 = vmatpush1.msra.mxu0 %v206
        %228 = vmatprep.subr.mxu0 %v209
        %229 = vmatpush1.msra.mxu0 %v208
        %230 = vmatprep.subr.mxu0 0.0
        %231 = vmatpush1.msra.mxu0 0.0
        %232 = vmatprep.subr.mxu0 0.0
        %233 = vmatpush1.msra.mxu0 0.0
        %234 = vmatprep.subr.mxu0 0.0
        %235 = vmatpush1.msra.mxu0 0.0
        %236 = vmatprep.subr.mxu0 0.0
        %237 = vmatpush1.msra.mxu0 0.0
        %238 = vmatprep.subr.mxu0 0.0
        %239 = vmatpush1.msra.mxu0 0.0
        %240 = vmatprep.subr.mxu0 0.0
        %241 = vmatpush1.msra.mxu0 0.0
        %242 = vmatprep.subr.mxu0 0.0
        %243 = vmatpush1.msra.mxu0 0.0
        %244 = vmatprep.subr.mxu0 0.0
        %245 = vmatpush1.msra.mxu0 0.0
        %246 = vmatprep.subr.mxu0 0.0
        %247 = vmatpush1.msra.mxu0 0.0
        %248 = vmatprep.subr.mxu0 0.0
        %249 = vmatpush1.msra.mxu0 0.0
        %250 = vmatprep.subr.mxu0 0.0
        %251 = vmatpush1.msra.mxu0 0.0
        %252 = vmatprep.subr.mxu0 0.0
        %253 = vmatpush1.msra.mxu0 0.0
        %254 = vmatprep.subr.mxu0 0.0
        %255 = vmatpush1.msra.mxu0 0.0
        %256 = vmatprep.subr.mxu0 0.0
        %257 = vmatpush1.msra.mxu0 0.0
        %258 = vmatprep.subr.mxu0 0.0
        %259 = vmatpush1.msra.mxu0 0.0
        %260 = vmatprep.subr.mxu0 0.0
        %261 = vmatpush1.msra.mxu0 0.0
        %262 = vmatprep.subr.mxu0 0.0
        %263 = vmatpush1.msra.mxu0 0.0
        %264 = vmatprep.subr.mxu0 0.0
        %265 = vmatpush1.msra.mxu0 0.0
        %266 = vmatprep.subr.mxu0 0.0
        %267 = vmatpush1.msra.mxu0 0.0
        %268 = vmatprep.subr.mxu0 0.0
        %269 = vmatpush1.msra.mxu0 0.0
        %270 = vmatprep.subr.mxu0 0.0
        %271 = vmatpush1.msra.mxu0 0.0
        %272 = vmatprep.subr.mxu0 0.0
        %273 = vmatpush1.msra.mxu0 0.0
        %274 = vmatprep.subr.mxu0 0.0
        %275 = vmatpush1.msra.mxu0 0.0
        %276 = vmatprep.subr.mxu0 0.0
        %277 = vmatpush1.msra.mxu0 0.0
        %278 = vmatprep.mubr.f32.mxu0 0.0
        %279 = vmatmul.mubr.f32.gmra.mrb[0].mxu0 %v212
        %v280 = vpop.f32.mrb[0].mxu0
        %v281 = vadd.f32 0.0, %v280
        %v282 = vpop.f32.mrb[0].mxu0
        %v283 = vadd.f32 0.0, %v282
        %284 = vdwg.mxu0
        %v285 = vlaneseq
        %v286 = vshrl.u32 %v285, 7
        %v287 = vlaneseq
        %v288 = vand.u32 %v287, 127
        %vm289 = vcmp.le.s32.totalorder %v288, %v286
        %v290 = vsel %vm289, 0.0, -1e+30
        %v291 = vmul.f32 %v281, 0.125
        %293 = vrot.lane.b32.xlu0 %v281, 64
        %v294 = vpop.permute.xlu0 %293
        %vm295 = vcmask 130048
        %v297 = vsel %vm295, %v291, 0
        %v299 = vsel %vm295, %v294, 0
        %301 = vmatprep.subr.mxu0 0.0
        %302 = vmatpush1.xpose.msra.mxu0 %v299
        %303 = vmatprep.subr.mxu0 0.0
        %304 = vmatpush1.xpose.msra.mxu0 0.0
        %305 = vmatprep.subr.mxu0 0.0
        %306 = vmatpush1.xpose.msra.mxu0 0.0
        %307 = vmatprep.subr.mxu0 0.0
        %308 = vmatpush1.xpose.msra.mxu0 0.0
        %309 = vmatprep.subr.mxu0 0.0
        %310 = vmatpush1.xpose.msra.mxu0 0.0
        %311 = vmatprep.subr.mxu0 0.0
        %312 = vmatpush1.xpose.msra.mxu0 0.0
        %313 = vmatprep.subr.mxu0 0.0
        %314 = vmatpush1.xpose.msra.mxu0 0.0
        %315 = vmatprep.subr.mxu0 0.0
        %316 = vmatpush1.xpose.msra.mxu0 0.0
        %317 = vmatprep.subr.mxu0 0.0
        %318 = vmatpush1.xpose.msra.mxu0 0.0
        %319 = vmatprep.subr.mxu0 0.0
        %320 = vmatpush1.xpose.msra.mxu0 0.0
        %321 = vmatprep.subr.mxu0 0.0
        %322 = vmatpush1.xpose.msra.mxu0 0.0
        %323 = vmatprep.subr.mxu0 0.0
        %324 = vmatpush1.xpose.msra.mxu0 0.0
        %325 = vmatprep.subr.mxu0 0.0
        %326 = vmatpush1.xpose.msra.mxu0 0.0
        %327 = vmatprep.subr.mxu0 0.0
        %328 = vmatpush1.xpose.msra.mxu0 0.0
        %329 = vmatprep.subr.mxu0 0.0
        %330 = vmatpush1.xpose.msra.mxu0 0.0
        %331 = vmatprep.subr.mxu0 0.0
        %332 = vmatpush1.xpose.msra.mxu0 0.0
        %333 = vmatprep.subr.mxu0 0.0
        %334 = vmatpush1.xpose.msra.mxu0 0.0
        %335 = vmatprep.subr.mxu0 0.0
        %336 = vmatpush1.xpose.msra.mxu0 0.0
        %337 = vmatprep.subr.mxu0 0.0
        %338 = vmatpush1.xpose.msra.mxu0 0.0
        %339 = vmatprep.subr.mxu0 0.0
        %340 = vmatpush1.xpose.msra.mxu0 0.0
        %341 = vmatprep.subr.mxu0 0.0
        %342 = vmatpush1.xpose.msra.mxu0 0.0
        %343 = vmatprep.subr.mxu0 0.0
        %344 = vmatpush1.xpose.msra.mxu0 0.0
        %345 = vmatprep.subr.mxu0 0.0
        %346 = vmatpush1.xpose.msra.mxu0 0.0
        %347 = vmatprep.subr.mxu0 0.0
        %348 = vmatpush1.xpose.msra.mxu0 0.0
        %349 = vmatprep.subr.mxu0 0.0
        %350 = vmatpush1.xpose.msra.mxu0 0.0
        %351 = vmatprep.subr.mxu0 0.0
        %352 = vmatpush1.xpose.msra.mxu0 0.0
        %353 = vmatprep.subr.mxu0 0.0
        %354 = vmatpush1.xpose.msra.mxu0 0.0
        %355 = vmatprep.subr.mxu0 0.0
        %356 = vmatpush1.xpose.msra.mxu0 0.0
        %357 = vmatprep.subr.mxu0 0.0
        %358 = vmatpush1.xpose.msra.mxu0 0.0
        %359 = vmatprep.subr.mxu0 0.0
        %360 = vmatpush1.xpose.msra.mxu0 0.0
        %361 = vmatprep.subr.mxu0 0.0
        %362 = vmatpush1.xpose.msra.mxu0 0.0
        %363 = vmatprep.subr.mxu0 0.0
        %364 = vmatpush1.xpose.msra.mxu0 0.0
        %365 = vmatprep.mubr.f32.mxu0 0.0
        %366 = vmatmul.mubr.f32.gmra.mrb[0].mxu0 %v297
        %v367 = vpop.f32.mrb[0].mxu0
        %v368 = vadd.f32 0.0, %v367
        %v369 = vpop.f32.mrb[0].mxu0
        %370 = vdwg.mxu0
        %371 = vrot.lane.b32.xlu0 %v291, 112
        %v372 = vpop.permute.xlu0 %371
        %373 = vrot.lane.b32.xlu0 %v281, 48
        %v374 = vpop.permute.xlu0 %373
        %v375 = vsel %vm295, %v372, 0
        %v377 = vsel %vm295, %v374, 0
        %379 = vmatprep.subr.mxu0 0.0
        %380 = vmatpush1.xpose.msra.mxu0 %v377
        %381 = vmatprep.subr.mxu0 0.0
        %382 = vmatpush1.xpose.msra.mxu0 0.0
        %383 = vmatprep.subr.mxu0 0.0
        %384 = vmatpush1.xpose.msra.mxu0 0.0
        %385 = vmatprep.subr.mxu0 0.0
        %386 = vmatpush1.xpose.msra.mxu0 0.0
        %387 = vmatprep.subr.mxu0 0.0
        %388 = vmatpush1.xpose.msra.mxu0 0.0
        %389 = vmatprep.subr.mxu0 0.0
        %390 = vmatpush1.xpose.msra.mxu0 0.0
        %391 = vmatprep.subr.mxu0 0.0
        %392 = vmatpush1.xpose.msra.mxu0 0.0
        %393 = vmatprep.subr.mxu0 0.0
        %394 = vmatpush1.xpose.msra.mxu0 0.0
        %395 = vmatprep.subr.mxu0 0.0
        %396 = vmatpush1.xpose.msra.mxu0 0.0
        %397 = vmatprep.subr.mxu0 0.0
        %398 = vmatpush1.xpose.msra.mxu0 0.0
        %399 = vmatprep.subr.mxu0 0.0
        %400 = vmatpush1.xpose.msra.mxu0 0.0
        %401 = vmatprep.subr.mxu0 0.0
        %402 = vmatpush1.xpose.msra.mxu0 0.0
        %403 = vmatprep.subr.mxu0 0.0
        %404 = vmatpush1.xpose.msra.mxu0 0.0
        %405 = vmatprep.subr.mxu0 0.0
        %406 = vmatpush1.xpose.msra.mxu0 0.0
        %407 = vmatprep.subr.mxu0 0.0
        %408 = vmatpush1.xpose.msra.mxu0 0.0
        %409 = vmatprep.subr.mxu0 0.0
        %410 = vmatpush1.xpose.msra.mxu0 0.0
        %411 = vmatprep.subr.mxu0 0.0
        %412 = vmatpush1.xpose.msra.mxu0 0.0
        %413 = vmatprep.subr.mxu0 0.0
        %414 = vmatpush1.xpose.msra.mxu0 0.0
        %415 = vmatprep.subr.mxu0 0.0
        %416 = vmatpush1.xpose.msra.mxu0 0.0
        %417 = vmatprep.subr.mxu0 0.0
        %418 = vmatpush1.xpose.msra.mxu0 0.0
        %419 = vmatprep.subr.mxu0 0.0
        %420 = vmatpush1.xpose.msra.mxu0 0.0
        %421 = vmatprep.subr.mxu0 0.0
        %422 = vmatpush1.xpose.msra.mxu0 0.0
        %423 = vmatprep.subr.mxu0 0.0
        %424 = vmatpush1.xpose.msra.mxu0 0.0
        %425 = vmatprep.subr.mxu0 0.0
        %426 = vmatpush1.xpose.msra.mxu0 0.0
        %427 = vmatprep.subr.mxu0 0.0
        %428 = vmatpush1.xpose.msra.mxu0 0.0
        %429 = vmatprep.subr.mxu0 0.0
        %430 = vmatpush1.xpose.msra.mxu0 0.0
        %431 = vmatprep.subr.mxu0 0.0
        %432 = vmatpush1.xpose.msra.mxu0 0.0
        %433 = vmatprep.subr.mxu0 0.0
        %434 = vmatpush1.xpose.msra.mxu0 0.0
        %435 = vmatprep.subr.mxu0 0.0
        %436 = vmatpush1.xpose.msra.mxu0 0.0
        %437 = vmatprep.subr.mxu0 0.0
        %438 = vmatpush1.xpose.msra.mxu0 0.0
        %439 = vmatprep.subr.mxu0 0.0
        %440 = vmatpush1.xpose.msra.mxu0 0.0
        %441 = vmatprep.subr.mxu0 0.0
        %442 = vmatpush1.xpose.msra.mxu0 0.0
        %443 = vmatprep.mubr.f32.mxu0 0.0
        %444 = vmatmul.mubr.f32.gmra.mrb[0].mxu0 %v375
        %v445 = vpop.f32.mrb[0].mxu0
        %v446 = vadd.f32 0.0, %v445
        %v447 = vpop.f32.mrb[0].mxu0
        %448 = vdwg.mxu0
        %449 = vrot.lane.b32.xlu0 %v291, 96
        %v450 = vpop.permute.xlu0 %449
        %451 = vrot.lane.b32.xlu0 %v281, 32
        %v452 = vpop.permute.xlu0 %451
        %v453 = vsel %vm295, %v450, 0
        %v455 = vsel %vm295, %v452, 0
        %457 = vmatprep.subr.mxu0 0.0
        %458 = vmatpush1.xpose.msra.mxu0 %v455
        %459 = vmatprep.subr.mxu0 0.0
        %460 = vmatpush1.xpose.msra.mxu0 0.0
        %461 = vmatprep.subr.mxu0 0.0
        %462 = vmatpush1.xpose.msra.mxu0 0.0
        %463 = vmatprep.subr.mxu0 0.0
        %464 = vmatpush1.xpose.msra.mxu0 0.0
        %465 = vmatprep.subr.mxu0 0.0
        %466 = vmatpush1.xpose.msra.mxu0 0.0
        %467 = vmatprep.subr.mxu0 0.0
        %468 = vmatpush1.xpose.msra.mxu0 0.0
        %469 = vmatprep.subr.mxu0 0.0
        %470 = vmatpush1.xpose.msra.mxu0 0.0
        %471 = vmatprep.subr.mxu0 0.0
        %472 = vmatpush1.xpose.msra.mxu0 0.0
        %473 = vmatprep.subr.mxu0 0.0
        %474 = vmatpush1.xpose.msra.mxu0 0.0
        %475 = vmatprep.subr.mxu0 0.0
        %476 = vmatpush1.xpose.msra.mxu0 0.0
        %477 = vmatprep.subr.mxu0 0.0
        %478 = vmatpush1.xpose.msra.mxu0 0.0
        %479 = vmatprep.subr.mxu0 0.0
        %480 = vmatpush1.xpose.msra.mxu0 0.0
        %481 = vmatprep.subr.mxu0 0.0
        %482 = vmatpush1.xpose.msra.mxu0 0.0
        %483 = vmatprep.subr.mxu0 0.0
        %484 = vmatpush1.xpose.msra.mxu0 0.0
        %485 = vmatprep.subr.mxu0 0.0
        %486 = vmatpush1.xpose.msra.mxu0 0.0
        %487 = vmatprep.subr.mxu0 0.0
        %488 = vmatpush1.xpose.msra.mxu0 0.0
        %489 = vmatprep.subr.mxu0 0.0
        %490 = vmatpush1.xpose.msra.mxu0 0.0
        %491 = vmatprep.subr.mxu0 0.0
        %492 = vmatpush1.xpose.msra.mxu0 0.0
        %493 = vmatprep.subr.mxu0 0.0
        %494 = vmatpush1.xpose.msra.mxu0 0.0
        %495 = vmatprep.subr.mxu0 0.0
        %496 = vmatpush1.xpose.msra.mxu0 0.0
        %497 = vmatprep.subr.mxu0 0.0
        %498 = vmatpush1.xpose.msra.mxu0 0.0
        %499 = vmatprep.subr.mxu0 0.0
        %500 = vmatpush1.xpose.msra.mxu0 0.0
        %501 = vmatprep.subr.mxu0 0.0
        %502 = vmatpush1.xpose.msra.mxu0 0.0
        %503 = vmatprep.subr.mxu0 0.0
        %504 = vmatpush1.xpose.msra.mxu0 0.0
        %505 = vmatprep.subr.mxu0 0.0
        %506 = vmatpush1.xpose.msra.mxu0 0.0
        %507 = vmatprep.subr.mxu0 0.0
        %508 = vmatpush1.xpose.msra.mxu0 0.0
        %509 = vmatprep.subr.mxu0 0.0
        %510 = vmatpush1.xpose.msra.mxu0 0.0
        %511 = vmatprep.subr.mxu0 0.0
        %512 = vmatpush1.xpose.msra.mxu0 0.0
        %513 = vmatprep.subr.mxu0 0.0
        %514 = vmatpush1.xpose.msra.mxu0 0.0
        %515 = vmatprep.subr.mxu0 0.0
        %516 = vmatpush1.xpose.msra.mxu0 0.0
        %517 = vmatprep.subr.mxu0 0.0
        %518 = vmatpush1.xpose.msra.mxu0 0.0
        %519 = vmatprep.subr.mxu0 0.0
        %520 = vmatpush1.xpose.msra.mxu0 0.0
        %521 = vmatprep.mubr.f32.mxu0 0.0
        %522 = vmatmul.mubr.f32.gmra.mrb[0].mxu0 %v453
        %v523 = vpop.f32.mrb[0].mxu0
        %v524 = vadd.f32 0.0, %v523
        %v525 = vpop.f32.mrb[0].mxu0
        %526 = vdwg.mxu0
        %527 = vrot.lane.b32.xlu0 %v291, 80
        %v528 = vpop.permute.xlu0 %527
        %529 = vrot.lane.b32.xlu0 %v281, 16
        %v530 = vpop.permute.xlu0 %529
        %v531 = vsel %vm295, %v528, 0
        %v533 = vsel %vm295, %v530, 0
        %535 = vmatprep.subr.mxu0 0.0
        %536 = vmatpush1.xpose.msra.mxu0 %v533
        %537 = vmatprep.subr.mxu0 0.0
        %538 = vmatpush1.xpose.msra.mxu0 0.0
        %539 = vmatprep.subr.mxu0 0.0
        %540 = vmatpush1.xpose.msra.mxu0 0.0
        %541 = vmatprep.subr.mxu0 0.0
        %542 = vmatpush1.xpose.msra.mxu0 0.0
        %543 = vmatprep.subr.mxu0 0.0
        %544 = vmatpush1.xpose.msra.mxu0 0.0
        %545 = vmatprep.subr.mxu0 0.0
        %546 = vmatpush1.xpose.msra.mxu0 0.0
        %547 = vmatprep.subr.mxu0 0.0
        %548 = vmatpush1.xpose.msra.mxu0 0.0
        %549 = vmatprep.subr.mxu0 0.0
        %550 = vmatpush1.xpose.msra.mxu0 0.0
        %551 = vmatprep.subr.mxu0 0.0
        %552 = vmatpush1.xpose.msra.mxu0 0.0
        %553 = vmatprep.subr.mxu0 0.0
        %554 = vmatpush1.xpose.msra.mxu0 0.0
        %555 = vmatprep.subr.mxu0 0.0
        %556 = vmatpush1.xpose.msra.mxu0 0.0
        %557 = vmatprep.subr.mxu0 0.0
        %558 = vmatpush1.xpose.msra.mxu0 0.0
        %559 = vmatprep.subr.mxu0 0.0
        %560 = vmatpush1.xpose.msra.mxu0 0.0
        %561 = vmatprep.subr.mxu0 0.0
        %562 = vmatpush1.xpose.msra.mxu0 0.0
        %563 = vmatprep.subr.mxu0 0.0
        %564 = vmatpush1.xpose.msra.mxu0 0.0
        %565 = vmatprep.subr.mxu0 0.0
        %566 = vmatpush1.xpose.msra.mxu0 0.0
        %567 = vmatprep.subr.mxu0 0.0
        %568 = vmatpush1.xpose.msra.mxu0 0.0
        %569 = vmatprep.subr.mxu0 0.0
        %570 = vmatpush1.xpose.msra.mxu0 0.0
        %571 = vmatprep.subr.mxu0 0.0
        %572 = vmatpush1.xpose.msra.mxu0 0.0
        %573 = vmatprep.subr.mxu0 0.0
        %574 = vmatpush1.xpose.msra.mxu0 0.0
        %575 = vmatprep.subr.mxu0 0.0
        %576 = vmatpush1.xpose.msra.mxu0 0.0
        %577 = vmatprep.subr.mxu0 0.0
        %578 = vmatpush1.xpose.msra.mxu0 0.0
        %579 = vmatprep.subr.mxu0 0.0
        %580 = vmatpush1.xpose.msra.mxu0 0.0
        %581 = vmatprep.subr.mxu0 0.0
        %582 = vmatpush1.xpose.msra.mxu0 0.0
        %583 = vmatprep.subr.mxu0 0.0
        %584 = vmatpush1.xpose.msra.mxu0 0.0
        %585 = vmatprep.subr.mxu0 0.0
        %586 = vmatpush1.xpose.msra.mxu0 0.0
        %587 = vmatprep.subr.mxu0 0.0
        %588 = vmatpush1.xpose.msra.mxu0 0.0
        %589 = vmatprep.subr.mxu0 0.0
        %590 = vmatpush1.xpose.msra.mxu0 0.0
        %591 = vmatprep.subr.mxu0 0.0
        %592 = vmatpush1.xpose.msra.mxu0 0.0
        %593 = vmatprep.subr.mxu0 0.0
        %594 = vmatpush1.xpose.msra.mxu0 0.0
        %595 = vmatprep.subr.mxu0 0.0
        %596 = vmatpush1.xpose.msra.mxu0 0.0
        %597 = vmatprep.subr.mxu0 0.0
        %598 = vmatpush1.xpose.msra.mxu0 0.0
        %599 = vmatprep.mubr.f32.mxu0 0.0
        %600 = vmatmul.mubr.f32.gmra.mrb[0].mxu0 %v531
        %v601 = vpop.f32.mrb[0].mxu0
        %v602 = vadd.f32 0.0, %v601
        %v603 = vpop.f32.mrb[0].mxu0
        %604 = vdwg.mxu0
        %v605 = vadd.f32 %v368, %v290
        %v606 = vadd.f32 %v446, %v290
        %v607 = vadd.f32 %v524, %v290
        %v608 = vadd.f32 %v602, %v290
        %vm609 = vcmask 64512
        %v610 = vsel %vm609, %v605, -inf
        %611 = vmax.xlane.f32.xlu0 %v610
        %v612 = vpop.xlane.xlu0 %611
        %v613 = vsel %vm609, %v606, -inf
        %614 = vmax.xlane.f32.xlu0 %v613
        %v615 = vpop.xlane.xlu0 %614
        %v616 = vsel %vm609, %v607, -inf
        %617 = vmax.xlane.f32.xlu0 %v616
        %v618 = vpop.xlane.xlu0 %617
        %v619 = vsel %vm609, %v608, -inf
        %620 = vmax.xlane.f32.xlu0 %v619
        %v621 = vpop.xlane.xlu0 %620
        %v622 = vsub.f32 %v605, %v612
        %v623 = vsub.f32 %v606, %v615
        %v624 = vsub.f32 %v607, %v618
        %v625 = vsub.f32 %v608, %v621
        %v626 = vmul.f32 %v622, 1.442695
        %v627 = vpow.pop %v626
        %v628 = vmul.f32 %v623, 1.442695
        %v629 = vpow.pop %v628
        %v630 = vmul.f32 %v624, 1.442695
        %v631 = vpow.pop %v630
        %v632 = vmul.f32 %v625, 1.442695
        %v633 = vpow.pop %v632
        %v634 = vsel %vm609, %v627, 0.0
        %635 = vadd.xlane.f32.xlu0 %v634
        %v636 = vpop.xlane.xlu0 %635
        %v637 = vsel %vm609, %v629, 0.0
        %638 = vadd.xlane.f32.xlu0 %v637
        %v639 = vpop.xlane.xlu0 %638
        %v640 = vsel %vm609, %v631, 0.0
        %641 = vadd.xlane.f32.xlu0 %v640
        %v642 = vpop.xlane.xlu0 %641
        %v643 = vsel %vm609, %v633, 0.0
        %644 = vadd.xlane.f32.xlu0 %v643
        %v645 = vpop.xlane.xlu0 %644
        %v646 = vrcp.pop %v636
        %v647 = vmul.f32 1.0, %v646
        %v648 = vrcp.pop %v639
        %v649 = vmul.f32 1.0, %v648
        %v650 = vrcp.pop %v642
        %v651 = vmul.f32 1.0, %v650
        %v652 = vrcp.pop %v645
        %v653 = vmul.f32 1.0, %v652
        %v655 = vsel %vm609, %v627, 0
        %657 = vmatprep.subr.mxu0 0.0
        %658 = vmatpush1.msra.mxu0 %v283
        %659 = vmatprep.subr.mxu0 0.0
        %660 = vmatpush1.msra.mxu0 0.0
        %661 = vmatprep.subr.mxu0 0.0
        %662 = vmatpush1.msra.mxu0 0.0
        %663 = vmatprep.subr.mxu0 0.0
        %664 = vmatpush1.msra.mxu0 0.0
        %665 = vmatprep.subr.mxu0 0.0
        %666 = vmatpush1.msra.mxu0 0.0
        %667 = vmatprep.subr.mxu0 0.0
        %668 = vmatpush1.msra.mxu0 0.0
        %669 = vmatprep.subr.mxu0 0.0
        %670 = vmatpush1.msra.mxu0 0.0
        %671 = vmatprep.subr.mxu0 0.0
        %672 = vmatpush1.msra.mxu0 0.0
        %673 = vmatprep.subr.mxu0 0.0
        %674 = vmatpush1.msra.mxu0 0.0
        %675 = vmatprep.subr.mxu0 0.0
        %676 = vmatpush1.msra.mxu0 0.0
        %677 = vmatprep.subr.mxu0 0.0
        %678 = vmatpush1.msra.mxu0 0.0
        %679 = vmatprep.subr.mxu0 0.0
        %680 = vmatpush1.msra.mxu0 0.0
        %681 = vmatprep.subr.mxu0 0.0
        %682 = vmatpush1.msra.mxu0 0.0
        %683 = vmatprep.subr.mxu0 0.0
        %684 = vmatpush1.msra.mxu0 0.0
        %685 = vmatprep.subr.mxu0 0.0
        %686 = vmatpush1.msra.mxu0 0.0
        %687 = vmatprep.subr.mxu0 0.0
        %688 = vmatpush1.msra.mxu0 0.0
        %689 = vmatprep.subr.mxu0 0.0
        %690 = vmatpush1.msra.mxu0 0.0
        %691 = vmatprep.subr.mxu0 0.0
        %692 = vmatpush1.msra.mxu0 0.0
        %693 = vmatprep.subr.mxu0 0.0
        %694 = vmatpush1.msra.mxu0 0.0
        %695 = vmatprep.subr.mxu0 0.0
        %696 = vmatpush1.msra.mxu0 0.0
        %697 = vmatprep.subr.mxu0 0.0
        %698 = vmatpush1.msra.mxu0 0.0
        %699 = vmatprep.subr.mxu0 0.0
        %700 = vmatpush1.msra.mxu0 0.0
        %701 = vmatprep.subr.mxu0 0.0
        %702 = vmatpush1.msra.mxu0 0.0
        %703 = vmatprep.subr.mxu0 0.0
        %704 = vmatpush1.msra.mxu0 0.0
        %705 = vmatprep.subr.mxu0 0.0
        %706 = vmatpush1.msra.mxu0 0.0
        %707 = vmatprep.subr.mxu0 0.0
        %708 = vmatpush1.msra.mxu0 0.0
        %709 = vmatprep.subr.mxu0 0.0
        %710 = vmatpush1.msra.mxu0 0.0
        %711 = vmatprep.subr.mxu0 0.0
        %712 = vmatpush1.msra.mxu0 0.0
        %713 = vmatprep.subr.mxu0 0.0
        %714 = vmatpush1.msra.mxu0 0.0
        %715 = vmatprep.subr.mxu0 0.0
        %716 = vmatpush1.msra.mxu0 0.0
        %717 = vmatprep.subr.mxu0 0.0
        %718 = vmatpush1.msra.mxu0 0.0
        %719 = vmatprep.subr.mxu0 0.0
        %720 = vmatpush1.msra.mxu0 0.0
        %721 = vmatprep.mubr.f32.mxu0 0.0
        %722 = vmatmul.mubr.f32.gmra.mrb[0].mxu0 %v655
        %v723 = vpop.f32.mrb[0].mxu0
        %v724 = vadd.f32 0.0, %v723
        %v725 = vpop.f32.mrb[0].mxu0
        %726 = vdwg.mxu0
        %v727 = vmul.f32 %v724, %v647
        %728 = vst.msk [vmem:[#allocation2] sm:$0xff] %vm295, %v727
        %730 = vrot.lane.b32.xlu0 %v283, 112
        %v731 = vpop.permute.xlu0 %730
        %v734 = vsel %vm609, %v629, 0
        %736 = vmatprep.subr.mxu0 0.0
        %737 = vmatpush1.msra.mxu0 %v731
        %738 = vmatprep.subr.mxu0 0.0
        %739 = vmatpush1.msra.mxu0 0.0
        %740 = vmatprep.subr.mxu0 0.0
        %741 = vmatpush1.msra.mxu0 0.0
        %742 = vmatprep.subr.mxu0 0.0
        %743 = vmatpush1.msra.mxu0 0.0
        %744 = vmatprep.subr.mxu0 0.0
        %745 = vmatpush1.msra.mxu0 0.0
        %746 = vmatprep.subr.mxu0 0.0
        %747 = vmatpush1.msra.mxu0 0.0
        %748 = vmatprep.subr.mxu0 0.0
        %749 = vmatpush1.msra.mxu0 0.0
        %750 = vmatprep.subr.mxu0 0.0
        %751 = vmatpush1.msra.mxu0 0.0
        %752 = vmatprep.subr.mxu0 0.0
        %753 = vmatpush1.msra.mxu0 0.0
        %754 = vmatprep.subr.mxu0 0.0
        %755 = vmatpush1.msra.mxu0 0.0
        %756 = vmatprep.subr.mxu0 0.0
        %757 = vmatpush1.msra.mxu0 0.0
        %758 = vmatprep.subr.mxu0 0.0
        %759 = vmatpush1.msra.mxu0 0.0
        %760 = vmatprep.subr.mxu0 0.0
        %761 = vmatpush1.msra.mxu0 0.0
        %762 = vmatprep.subr.mxu0 0.0
        %763 = vmatpush1.msra.mxu0 0.0
        %764 = vmatprep.subr.mxu0 0.0
        %765 = vmatpush1.msra.mxu0 0.0
        %766 = vmatprep.subr.mxu0 0.0
        %767 = vmatpush1.msra.mxu0 0.0
        %768 = vmatprep.subr.mxu0 0.0
        %769 = vmatpush1.msra.mxu0 0.0
        %770 = vmatprep.subr.mxu0 0.0
        %771 = vmatpush1.msra.mxu0 0.0
        %772 = vmatprep.subr.mxu0 0.0
        %773 = vmatpush1.msra.mxu0 0.0
        %774 = vmatprep.subr.mxu0 0.0
        %775 = vmatpush1.msra.mxu0 0.0
        %776 = vmatprep.subr.mxu0 0.0
        %777 = vmatpush1.msra.mxu0 0.0
        %778 = vmatprep.subr.mxu0 0.0
        %779 = vmatpush1.msra.mxu0 0.0
        %780 = vmatprep.subr.mxu0 0.0
        %781 = vmatpush1.msra.mxu0 0.0
        %782 = vmatprep.subr.mxu0 0.0
        %783 = vmatpush1.msra.mxu0 0.0
        %784 = vmatprep.subr.mxu0 0.0
        %785 = vmatpush1.msra.mxu0 0.0
        %786 = vmatprep.subr.mxu0 0.0
        %787 = vmatpush1.msra.mxu0 0.0
        %788 = vmatprep.subr.mxu0 0.0
        %789 = vmatpush1.msra.mxu0 0.0
        %790 = vmatprep.subr.mxu0 0.0
        %791 = vmatpush1.msra.mxu0 0.0
        %792 = vmatprep.subr.mxu0 0.0
        %793 = vmatpush1.msra.mxu0 0.0
        %794 = vmatprep.subr.mxu0 0.0
        %795 = vmatpush1.msra.mxu0 0.0
        %796 = vmatprep.subr.mxu0 0.0
        %797 = vmatpush1.msra.mxu0 0.0
        %798 = vmatprep.subr.mxu0 0.0
        %799 = vmatpush1.msra.mxu0 0.0
        %800 = vmatprep.mubr.f32.mxu0 0.0
        %801 = vmatmul.mubr.f32.gmra.mrb[0].mxu0 %v734
        %v802 = vpop.f32.mrb[0].mxu0
        %v803 = vadd.f32 0.0, %v802
        %v804 = vpop.f32.mrb[0].mxu0
        %805 = vdwg.mxu0
        %v806 = vmul.f32 %v803, %v649
        %808 = vrot.lane.b32.xlu0 %v806, 16
        %v809 = vpop.permute.xlu0 %808
        %vm811 = vcmask 261248
        %812 = vst.msk [vmem:[#allocation2] sm:$0xff] %vm811, %v809
        %813 = vrot.lane.b32.xlu0 %v283, 96
        %v814 = vpop.permute.xlu0 %813
        %v817 = vsel %vm609, %v631, 0
        %819 = vmatprep.subr.mxu0 0.0
        %820 = vmatpush1.msra.mxu0 %v814
        %821 = vmatprep.subr.mxu0 0.0
        %822 = vmatpush1.msra.mxu0 0.0
        %823 = vmatprep.subr.mxu0 0.0
        %824 = vmatpush1.msra.mxu0 0.0
        %825 = vmatprep.subr.mxu0 0.0
        %826 = vmatpush1.msra.mxu0 0.0
        %827 = vmatprep.subr.mxu0 0.0
        %828 = vmatpush1.msra.mxu0 0.0
        %829 = vmatprep.subr.mxu0 0.0
        %830 = vmatpush1.msra.mxu0 0.0
        %831 = vmatprep.subr.mxu0 0.0
        %832 = vmatpush1.msra.mxu0 0.0
        %833 = vmatprep.subr.mxu0 0.0
        %834 = vmatpush1.msra.mxu0 0.0
        %835 = vmatprep.subr.mxu0 0.0
        %836 = vmatpush1.msra.mxu0 0.0
        %837 = vmatprep.subr.mxu0 0.0
        %838 = vmatpush1.msra.mxu0 0.0
        %839 = vmatprep.subr.mxu0 0.0
        %840 = vmatpush1.msra.mxu0 0.0
        %841 = vmatprep.subr.mxu0 0.0
        %842 = vmatpush1.msra.mxu0 0.0
        %843 = vmatprep.subr.mxu0 0.0
        %844 = vmatpush1.msra.mxu0 0.0
        %845 = vmatprep.subr.mxu0 0.0
        %846 = vmatpush1.msra.mxu0 0.0
        %847 = vmatprep.subr.mxu0 0.0
        %848 = vmatpush1.msra.mxu0 0.0
        %849 = vmatprep.subr.mxu0 0.0
        %850 = vmatpush1.msra.mxu0 0.0
        %851 = vmatprep.subr.mxu0 0.0
        %852 = vmatpush1.msra.mxu0 0.0
        %853 = vmatprep.subr.mxu0 0.0
        %854 = vmatpush1.msra.mxu0 0.0
        %855 = vmatprep.subr.mxu0 0.0
        %856 = vmatpush1.msra.mxu0 0.0
        %857 = vmatprep.subr.mxu0 0.0
        %858 = vmatpush1.msra.mxu0 0.0
        %859 = vmatprep.subr.mxu0 0.0
        %860 = vmatpush1.msra.mxu0 0.0
        %861 = vmatprep.subr.mxu0 0.0
        %862 = vmatpush1.msra.mxu0 0.0
        %863 = vmatprep.subr.mxu0 0.0
        %864 = vmatpush1.msra.mxu0 0.0
        %865 = vmatprep.subr.mxu0 0.0
        %866 = vmatpush1.msra.mxu0 0.0
        %867 = vmatprep.subr.mxu0 0.0
        %868 = vmatpush1.msra.mxu0 0.0
        %869 = vmatprep.subr.mxu0 0.0
        %870 = vmatpush1.msra.mxu0 0.0
        %871 = vmatprep.subr.mxu0 0.0
        %872 = vmatpush1.msra.mxu0 0.0
        %873 = vmatprep.subr.mxu0 0.0
        %874 = vmatpush1.msra.mxu0 0.0
        %875 = vmatprep.subr.mxu0 0.0
        %876 = vmatpush1.msra.mxu0 0.0
        %877 = vmatprep.subr.mxu0 0.0
        %878 = vmatpush1.msra.mxu0 0.0
        %879 = vmatprep.subr.mxu0 0.0
        %880 = vmatpush1.msra.mxu0 0.0
        %881 = vmatprep.subr.mxu0 0.0
        %882 = vmatpush1.msra.mxu0 0.0
        %883 = vmatprep.mubr.f32.mxu0 0.0
        %884 = vmatmul.mubr.f32.gmra.mrb[0].mxu0 %v817
        %v885 = vpop.f32.mrb[0].mxu0
        %v886 = vadd.f32 0.0, %v885
        %v887 = vpop.f32.mrb[0].mxu0
        %888 = vdwg.mxu0
        %v889 = vmul.f32 %v886, %v651
        %891 = vrot.lane.b32.xlu0 %v889, 32
        %v892 = vpop.permute.xlu0 %891
        %vm894 = vcmask 392448
        %895 = vst.msk [vmem:[#allocation2] sm:$0xff] %vm894, %v892
        %896 = vrot.lane.b32.xlu0 %v283, 80
        %v897 = vpop.permute.xlu0 %896
        %v900 = vsel %vm609, %v633, 0
        %902 = vmatprep.subr.mxu0 0.0
        %903 = vmatpush1.msra.mxu0 %v897
        %904 = vmatprep.subr.mxu0 0.0
        %905 = vmatpush1.msra.mxu0 0.0
        %906 = vmatprep.subr.mxu0 0.0
        %907 = vmatpush1.msra.mxu0 0.0
        %908 = vmatprep.subr.mxu0 0.0
        %909 = vmatpush1.msra.mxu0 0.0
        %910 = vmatprep.subr.mxu0 0.0
        %911 = vmatpush1.msra.mxu0 0.0
        %912 = vmatprep.subr.mxu0 0.0
        %913 = vmatpush1.msra.mxu0 0.0
        %914 = vmatprep.subr.mxu0 0.0
        %915 = vmatpush1.msra.mxu0 0.0
        %916 = vmatprep.subr.mxu0 0.0
        %917 = vmatpush1.msra.mxu0 0.0
        %918 = vmatprep.subr.mxu0 0.0
        %919 = vmatpush1.msra.mxu0 0.0
        %920 = vmatprep.subr.mxu0 0.0
        %921 = vmatpush1.msra.mxu0 0.0
        %922 = vmatprep.subr.mxu0 0.0
        %923 = vmatpush1.msra.mxu0 0.0
        %924 = vmatprep.subr.mxu0 0.0
        %925 = vmatpush1.msra.mxu0 0.0
        %926 = vmatprep.subr.mxu0 0.0
        %927 = vmatpush1.msra.mxu0 0.0
        %928 = vmatprep.subr.mxu0 0.0
        %929 = vmatpush1.msra.mxu0 0.0
        %930 = vmatprep.subr.mxu0 0.0
        %931 = vmatpush1.msra.mxu0 0.0
        %932 = vmatprep.subr.mxu0 0.0
        %933 = vmatpush1.msra.mxu0 0.0
        %934 = vmatprep.subr.mxu0 0.0
        %935 = vmatpush1.msra.mxu0 0.0
        %936 = vmatprep.subr.mxu0 0.0
        %937 = vmatpush1.msra.mxu0 0.0
        %938 = vmatprep.subr.mxu0 0.0
        %939 = vmatpush1.msra.mxu0 0.0
        %940 = vmatprep.subr.mxu0 0.0
        %941 = vmatpush1.msra.mxu0 0.0
        %942 = vmatprep.subr.mxu0 0.0
        %943 = vmatpush1.msra.mxu0 0.0
        %944 = vmatprep.subr.mxu0 0.0
        %945 = vmatpush1.msra.mxu0 0.0
        %946 = vmatprep.subr.mxu0 0.0
        %947 = vmatpush1.msra.mxu0 0.0
        %948 = vmatprep.subr.mxu0 0.0
        %949 = vmatpush1.msra.mxu0 0.0
        %950 = vmatprep.subr.mxu0 0.0
        %951 = vmatpush1.msra.mxu0 0.0
        %952 = vmatprep.subr.mxu0 0.0
        %953 = vmatpush1.msra.mxu0 0.0
        %954 = vmatprep.subr.mxu0 0.0
        %955 = vmatpush1.msra.mxu0 0.0
        %956 = vmatprep.subr.mxu0 0.0
        %957 = vmatpush1.msra.mxu0 0.0
        %958 = vmatprep.subr.mxu0 0.0
        %959 = vmatpush1.msra.mxu0 0.0
        %960 = vmatprep.subr.mxu0 0.0
        %961 = vmatpush1.msra.mxu0 0.0
        %962 = vmatprep.subr.mxu0 0.0
        %963 = vmatpush1.msra.mxu0 0.0
        %964 = vmatprep.subr.mxu0 0.0
        %965 = vmatpush1.msra.mxu0 0.0
        %966 = vmatprep.mubr.f32.mxu0 0.0
        %967 = vmatmul.mubr.f32.gmra.mrb[0].mxu0 %v900
        %v968 = vpop.f32.mrb[0].mxu0
        %v969 = vadd.f32 0.0, %v968
        %v970 = vpop.f32.mrb[0].mxu0
        %971 = vdwg.mxu0
        %v972 = vmul.f32 %v969, %v653
        %974 = vrot.lane.b32.xlu0 %v972, 48
        %v975 = vpop.permute.xlu0 %974
        %vm977 = vcmask 523648
        %978 = vst.msk [vmem:[#allocation2] sm:$0xff] %vm977, %v975
        %v979 = vld [vmem:[#allocation2] sm:$0xff]
        %v980 = vld [vmem:[%s2] sm:$0xff]
        %v981 = vld [vmem:[%s2 + $0x8] sm:$0xff]
        %v982 = vld [vmem:[%s2 + $0x10] sm:$0xff]
        %v983 = vld [vmem:[%s2 + $0x18] sm:$0xff]
        %v984 = vld [vmem:[%s2 + $0x20] sm:$0xff]
        %v985 = vld [vmem:[%s2 + $0x28] sm:$0xff]
        %v986 = vld [vmem:[%s2 + $0x30] sm:$0xff]
        %v987 = vld [vmem:[%s2 + $0x38] sm:$0xff]
        %v988 = vld [vmem:[%s3] sm:$0x1]
        %v990 = vlaneseq
        %v991 = vshrl.u32 %v990, 7
        %v992 = vsub.s32 0, %v991
        %v993 = vrot.slane %v988, %v992
        %v996 = vsel %vm210, %v979, 0
        %998 = vmatprep.subr.mxu0 0.0
        %999 = vmatpush1.msra.mxu0 %v980
        %1000 = vmatprep.subr.mxu0 0.0
        %1001 = vmatpush1.msra.mxu0 %v981
        %1002 = vmatprep.subr.mxu0 0.0
        %1003 = vmatpush1.msra.mxu0 %v982
        %1004 = vmatprep.subr.mxu0 0.0
        %1005 = vmatpush1.msra.mxu0 %v983
        %1006 = vmatprep.subr.mxu0 0.0
        %1007 = vmatpush1.msra.mxu0 %v984
        %1008 = vmatprep.subr.mxu0 0.0
        %1009 = vmatpush1.msra.mxu0 %v985
        %1010 = vmatprep.subr.mxu0 0.0
        %1011 = vmatpush1.msra.mxu0 %v986
        %1012 = vmatprep.subr.mxu0 0.0
        %1013 = vmatpush1.msra.mxu0 %v987
        %1014 = vmatprep.subr.mxu0 0.0
        %1015 = vmatpush1.msra.mxu0 0.0
        %1016 = vmatprep.subr.mxu0 0.0
        %1017 = vmatpush1.msra.mxu0 0.0
        %1018 = vmatprep.subr.mxu0 0.0
        %1019 = vmatpush1.msra.mxu0 0.0
        %1020 = vmatprep.subr.mxu0 0.0
        %1021 = vmatpush1.msra.mxu0 0.0
        %1022 = vmatprep.subr.mxu0 0.0
        %1023 = vmatpush1.msra.mxu0 0.0
        %1024 = vmatprep.subr.mxu0 0.0
        %1025 = vmatpush1.msra.mxu0 0.0
        %1026 = vmatprep.subr.mxu0 0.0
        %1027 = vmatpush1.msra.mxu0 0.0
        %1028 = vmatprep.subr.mxu0 0.0
        %1029 = vmatpush1.msra.mxu0 0.0
        %1030 = vmatprep.subr.mxu0 0.0
        %1031 = vmatpush1.msra.mxu0 0.0
        %1032 = vmatprep.subr.mxu0 0.0
        %1033 = vmatpush1.msra.mxu0 0.0
        %1034 = vmatprep.subr.mxu0 0.0
        %1035 = vmatpush1.msra.mxu0 0.0
        %1036 = vmatprep.subr.mxu0 0.0
        %1037 = vmatpush1.msra.mxu0 0.0
        %1038 = vmatprep.subr.mxu0 0.0
        %1039 = vmatpush1.msra.mxu0 0.0
        %1040 = vmatprep.subr.mxu0 0.0
        %1041 = vmatpush1.msra.mxu0 0.0
        %1042 = vmatprep.subr.mxu0 0.0
        %1043 = vmatpush1.msra.mxu0 0.0
        %1044 = vmatprep.subr.mxu0 0.0
        %1045 = vmatpush1.msra.mxu0 0.0
        %1046 = vmatprep.subr.mxu0 0.0
        %1047 = vmatpush1.msra.mxu0 0.0
        %1048 = vmatprep.subr.mxu0 0.0
        %1049 = vmatpush1.msra.mxu0 0.0
        %1050 = vmatprep.subr.mxu0 0.0
        %1051 = vmatpush1.msra.mxu0 0.0
        %1052 = vmatprep.subr.mxu0 0.0
        %1053 = vmatpush1.msra.mxu0 0.0
        %1054 = vmatprep.subr.mxu0 0.0
        %1055 = vmatpush1.msra.mxu0 0.0
        %1056 = vmatprep.subr.mxu0 0.0
        %1057 = vmatpush1.msra.mxu0 0.0
        %1058 = vmatprep.subr.mxu0 0.0
        %1059 = vmatpush1.msra.mxu0 0.0
        %1060 = vmatprep.subr.mxu0 0.0
        %1061 = vmatpush1.msra.mxu0 0.0
        %1062 = vmatprep.mubr.f32.mxu0 0.0
        %1063 = vmatmul.mubr.f32.gmra.mrb[0].mxu0 %v996
        %v1064 = vpop.f32.mrb[0].mxu0
        %v1065 = vadd.f32 %v993, %v1064
        %v1066 = vpop.f32.mrb[0].mxu0
        %1067 = vdwg.mxu0
        %1068 = vst.msk [vmem:[%s188] sm:$0xff] %vm210, %v1065
        %s1069 = sand.u32 %s115, 1
        %s1070 = scalar_lea.sflag [#allocation4], %s1069
        %s1071 = sand.u32 %s115, 1
        %s1072 = smul.addr %s1071, 8
        %s1073 = scalar_lea.vmem [#allocation3], %s1072
        // Predicated region
        $region37: #{multi_head_attention.1} parent=35 // pred_check
          %p1074 = pneg %p125
        $region38: #{multi_head_attention.1} parent=35 // pred_check_branch
          %1076 = sbr.rel (%p1074) target = $region40
        $region39: #{multi_head_attention.1} parent=35 // pred_region
          %s1078 = ssub.s32 128, 128
          %1079 = vsyncadd %s1070, %s1078
          %s1080 = smul.addr %s18, 128
          %s1081 = scalar_lea.hbm %s4, %s1080
          %s1083 = sshll.u32 %s1073, 4
          %s1084 = int_to_ptr.vmem [resolvable:$true] %s1083
          %1086 = dma.vmem_to_hbm [thread:$0]  %s1084, 128, %s1081, %s1070
        $region40: #{multi_head_attention.1} parent=35 // pred_fallthru
          _
      $region36: #{multi_head_attention.1} parent=5 // pred_fallthru
        _
      %p1087 = scmp.le.s32.totalorder 2, %s13
      // Predicated region
      $region41: #{multi_head_attention.1} parent=5 // pred_check
        %p1088 = pneg %p1087
      $region42: #{multi_head_attention.1} parent=5 // pred_check_branch
        %1090 = sbr.rel (%p1088) target = $region44
      $region43: #{multi_head_attention.1} parent=5 // pred_region
        %s1091 = ssub.s32 %s13, 2
        // Predicated region
        $region45: #{multi_head_attention.1} parent=43 // pred_check
          %p1092 = pneg %p131
        $region46: #{multi_head_attention.1} parent=43 // pred_check_branch
          %1094 = sbr.rel (%p1092) target = $region48
        $region47: #{multi_head_attention.1} parent=43 // pred_region
          %s1095 = sand.u32 %s116, 1
          %s1096 = scalar_lea.sflag [#allocation4], %s1095
          %s1097 = sand.u32 %s116, 1
          %s1098 = smul.addr %s1097, 8
          %s1099 = scalar_lea.vmem [#allocation3], %s1098
          %1100 = dma.done %s1096, 128
        $region48: #{multi_head_attention.1} parent=43 // pred_fallthru
          _
      $region44: #{multi_head_attention.1} parent=5 // pred_fallthru
        _
    $region6: #{multi_head_attention.1} parent=1 // loop_footer
      %s17 = sadd.s32 1, %s13
    $region7: #{multi_head_attention.1} parent=1 // loop_footer_branch
      %12 = sbr.rel target = $region3
    $region8: #{multi_head_attention.1} parent=1 // loop_exit
      _
    %1101 = vsyncpa [#allocation4], 1
    %s1102 = scalar_lea.sflag [#allocation4], 1
    %1103 = vsyncpa %s1102, 1

</llo_original>
